<compile_context>
chip_gen: v5e
topology: v5e:2x2
jax: 0.10.0
libtpu: 0.0.40
codegen_flags: <defaults>
</compile_context>

<pallas_src>
import jax
import jax.numpy as jnp
from jax.experimental import pallas as pl
from jax.experimental.pallas import tpu as pltpu


# ---------------------------------------------------------------------------
# "AEConf"-style hyper-parameters (deterministic, in-script)
# ---------------------------------------------------------------------------
LATENT_DIM = 8
DECODER_NEURONS = [32, 64]          # conf.decoder_neurons
WINDOW_SIZE = 16                    # conf.window_size (appended in __init__)
LAYER_SIZES = DECODER_NEURONS + [WINDOW_SIZE]
BATCH = 8

SMALL_BATCH_MAX = 512               # collapsed-grid path at/below this batch
TILE_B_LARGE = 2048                 # lane-axis batch tile for the big path


def _round_up(x, m):
    return ((x + m - 1) // m) * m


def _decoder_mlp_t_kernel(*refs):
    """Fused feature-major MLP: hT = relu(W_i @ hT + b_i), chained.

    refs = (xT_ref, w0_ref, b0_ref, w1_ref, b1_ref, w2_ref, b2_ref, oT_ref).
    xT block is (d_in, tile_b): batch on the 128-lane axis.  Weights keep the
    native nn.Linear (out, in) layout; biases are (out, 1) and broadcast over
    the lane axis.  Matmuls run on the MXU with f32 accumulation; bias + ReLU
    stay in f32 on the VPU (safe on v5e, cheap everywhere).
    """
    xT_ref, oT_ref = refs[0], refs[-1]
    wb_refs = refs[1:-1]
    h = xT_ref[...]
    for i in range(0, len(wb_refs), 2):
        w_ref, b_ref = wb_refs[i], wb_refs[i + 1]
        h = jnp.maximum(
            jnp.dot(w_ref[...], h.astype(w_ref.dtype),
                    preferred_element_type=jnp.float32)
            + b_ref[...],
            0.0)
    oT_ref[...] = h.astype(oT_ref.dtype)
    # TODO(synk): training-mode Dropout (stochastic masking via pltpu.prng_*)
    # is intentionally omitted; eval-mode Dropout is the identity.


def _cost_estimate(batch, params, io_dtype):
    """Advisory cost hint: FLOPs are tiny, traffic dominated by x + out."""
    itemsize = jnp.dtype(io_dtype).itemsize
    d_in = params[0][0].shape[1]
    d_out = params[-1][0].shape[0]
    flops = 0
    bytes_accessed = batch * d_in * itemsize + batch * d_out * itemsize
    for w, b in params:
        out_f, in_f = w.shape
        flops += 2 * batch * out_f * in_f + 2 * batch * out_f
        bytes_accessed += w.size * itemsize + b.size * 4
    return pl.CostEstimate(flops=flops, transcendentals=0,
                           bytes_accessed=bytes_accessed)


def decoder_forward(x, params, *, tile_b=TILE_B_LARGE, io_dtype=None):
    """params: list of (W, b) with W shape (out, in), b shape (out, 1).

    io_dtype: storage dtype for x / W / output (e.g. jnp.bfloat16 on v6e/v7x
    to halve HBM traffic on the mem-bound path).  Biases and all post-matmul
    math stay f32.
    """
    io_dtype = jnp.dtype(io_dtype) if io_dtype is not None else x.dtype
    B, d_in = x.shape
    d_out = params[-1][0].shape[0]

    flat_wb = []
    for w, b in params:
        flat_wb += [w.astype(io_dtype), b.astype(jnp.float32)]

    xT = x.T.astype(io_dtype)                      # feature-major: (d_in, B)
    cost = _cost_estimate(B, params, io_dtype)

    if B <= SMALL_BATCH_MAX:
        # Collapsed grid: the whole problem is a few KB, so map every operand
        # whole into VMEM and skip all pipeline/double-buffer machinery.
        vmem = pl.BlockSpec(memory_space=pltpu.MemorySpace.VMEM)
        outT = pl.pallas_call(
            _decoder_mlp_t_kernel,
            out_shape=jax.ShapeDtypeStruct((d_out, B), io_dtype),
            in_specs=[vmem] * (1 + len(flat_wb)),
            out_specs=vmem,
            cost_estimate=cost,
        )(xT, *flat_wb)
        return outT.T

    # --- Big-batch path: batch on the lane axis, tiled over the grid. ---
    # Pad B to a multiple of the (128-aligned) tile so every block is full
    # and lane-dense; padded columns are sliced off after the call.
    tile_b = max(128, _round_up(min(tile_b, _round_up(B, 128)), 128))
    b_pad = _round_up(B, tile_b)
    if b_pad != B:
        xT = jnp.pad(xT, ((0, 0), (0, b_pad - B)))
    grid = (b_pad // tile_b,)

    # Weights/biases: whole-array, resident in VMEM for the entire grid (no
    # per-step DMA / double buffering for constants).
    resident = pl.BlockSpec(memory_space=pltpu.MemorySpace.VMEM)
    in_specs = [pl.BlockSpec((d_in, tile_b), lambda i: (0, i))]
    in_specs += [resident] * len(flat_wb)
    out_specs = pl.BlockSpec((d_out, tile_b), lambda i: (0, i))

    outT = pl.pallas_call(
        _decoder_mlp_t_kernel,
        out_shape=jax.ShapeDtypeStruct((d_out, b_pad), io_dtype),
        grid=grid,
        in_specs=in_specs,
        out_specs=out_specs,
        # Independent batch tiles: >=2 grid steps shard across v7x's 2 TCs.
        compiler_params=pltpu.CompilerParams(
            dimension_semantics=("parallel",)),
        cost_estimate=cost,
    )(xT, *flat_wb)
    return outT[:, :B].T


def init_params(key):
    """Deterministic init mirroring nn.Linear shapes: W (out, in), b (out,).

    Stored as W (out, in) (used directly by the feature-major kernel) and
    b reshaped to (out, 1) (broadcasts over the batch/lane axis).
    """
    params = []
    in_c = LATENT_DIM
    for h_dim in LAYER_SIZES:
        key, kw, kb = jax.random.split(key, 3)
        bound = 1.0 / jnp.sqrt(in_c)
        w = jax.random.uniform(kw, (h_dim, in_c), jnp.float32, -bound, bound)
        b = jax.random.uniform(kb, (h_dim,), jnp.float32, -bound, bound)
        params.append((w, b.reshape(h_dim, 1)))
        in_c = h_dim
    return params


def decoder_reference(x, params):
    h = x
    for w, b in params:
        h = jnp.maximum(h @ w.T + b[:, 0], 0.0)
    return h


if __name__ == "__main__":
    key = jax.random.PRNGKey(0)
    key, kx = jax.random.split(key)
    params = init_params(key)

    # 1) Demo shape: collapsed-grid (no pipeline) path.
    x = jax.random.normal(kx, (BATCH, LATENT_DIM), jnp.float32)
    out = jax.block_until_ready(decoder_forward(x, params))
    ref = decoder_reference(x, params)
    assert out.shape == (BATCH, WINDOW_SIZE)
    assert jnp.allclose(out, ref, atol=1e-5, rtol=1e-5)

    # 2) Batched feature-major path: non-multiple batch exercises the
    #    pad + slice handling; tile_b=128 keeps shapes small (grid of 5).
    x2 = jax.random.normal(jax.random.PRNGKey(1), (600, LATENT_DIM),
                           jnp.float32)
    out2 = jax.block_until_ready(decoder_forward(x2, params, tile_b=128))
    ref2 = decoder_reference(x2, params)
    assert out2.shape == (600, WINDOW_SIZE)
    assert jnp.allclose(out2, ref2, atol=1e-5, rtol=1e-5)

    # 3) bf16 I/O variant (the mem-bound win on v6e/v7x); bias+ReLU stay f32.
    out3 = jax.block_until_ready(
        decoder_forward(x2, params, tile_b=128, io_dtype=jnp.bfloat16))
    assert out3.shape == (600, WINDOW_SIZE)
    assert jnp.allclose(out3.astype(jnp.float32), ref2, atol=1e-1, rtol=5e-2)

    print("KERNEL_OK")
</pallas_src>

<mosaic_0001>
module attributes {stable_mosaic.version = 11 : i64} {
  func.func @_decoder_mlp_t_kernel(%arg0: memref<8x8xf32, #tpu.memory_space<vmem>>, %arg1: memref<32x8xf32, #tpu.memory_space<vmem>>, %arg2: memref<32x1xf32, #tpu.memory_space<vmem>>, %arg3: memref<64x32xf32, #tpu.memory_space<vmem>>, %arg4: memref<64x1xf32, #tpu.memory_space<vmem>>, %arg5: memref<16x64xf32, #tpu.memory_space<vmem>>, %arg6: memref<16x1xf32, #tpu.memory_space<vmem>>, %arg7: memref<16x8xf32, #tpu.memory_space<vmem>>) attributes {dimension_semantics = [], scalar_prefetch = 0 : i64, scratch_operands = 0 : i64, tpu.core_type = #tpu.core_type<tc>} {
    %c0 = arith.constant 0 : index
    %c0_0 = arith.constant 0 : index
    %0 = vector.load %arg0[%c0, %c0_0] : memref<8x8xf32, #tpu.memory_space<vmem>>, vector<8x8xf32>
    %c0_1 = arith.constant 0 : index
    %c0_2 = arith.constant 0 : index
    %1 = vector.load %arg1[%c0_1, %c0_2] : memref<32x8xf32, #tpu.memory_space<vmem>>, vector<32x8xf32>
    %cst = arith.constant dense<0.000000e+00> : vector<32x8xf32>
    %2 = tpu.matmul %1, %0, %cst {dimension_numbers = #tpu.dot_dimension_numbers<[1], [0], [0], [1], [0, 0, 1, 1], [], []>} : vector<32x8xf32>, vector<8x8xf32>, vector<32x8xf32> -> vector<32x8xf32>
    %c0_3 = arith.constant 0 : index
    %c0_4 = arith.constant 0 : index
    %3 = vector.load %arg2[%c0_3, %c0_4] : memref<32x1xf32, #tpu.memory_space<vmem>>, vector<32x1xf32>
    %4 = vector.broadcast %3 : vector<32x1xf32> to vector<32x8xf32>
    %5 = arith.addf %2, %4 : vector<32x8xf32>
    %cst_5 = arith.constant 0.000000e+00 : f32
    %6 = vector.broadcast %cst_5 : f32 to vector<32x8xf32>
    %7 = arith.maximumf %5, %6 : vector<32x8xf32>
    %c0_6 = arith.constant 0 : index
    %c0_7 = arith.constant 0 : index
    %8 = vector.load %arg3[%c0_6, %c0_7] : memref<64x32xf32, #tpu.memory_space<vmem>>, vector<64x32xf32>
    %cst_8 = arith.constant dense<0.000000e+00> : vector<64x8xf32>
    %9 = tpu.matmul %8, %7, %cst_8 {dimension_numbers = #tpu.dot_dimension_numbers<[1], [0], [0], [1], [0, 0, 1, 1], [], []>} : vector<64x32xf32>, vector<32x8xf32>, vector<64x8xf32> -> vector<64x8xf32>
    %c0_9 = arith.constant 0 : index
    %c0_10 = arith.constant 0 : index
    %10 = vector.load %arg4[%c0_9, %c0_10] : memref<64x1xf32, #tpu.memory_space<vmem>>, vector<64x1xf32>
    %11 = vector.broadcast %10 : vector<64x1xf32> to vector<64x8xf32>
    %12 = arith.addf %9, %11 : vector<64x8xf32>
    %cst_11 = arith.constant 0.000000e+00 : f32
    %13 = vector.broadcast %cst_11 : f32 to vector<64x8xf32>
    %14 = arith.maximumf %12, %13 : vector<64x8xf32>
    %c0_12 = arith.constant 0 : index
    %c0_13 = arith.constant 0 : index
    %15 = vector.load %arg5[%c0_12, %c0_13] : memref<16x64xf32, #tpu.memory_space<vmem>>, vector<16x64xf32>
    %cst_14 = arith.constant dense<0.000000e+00> : vector<16x8xf32>
    %16 = tpu.matmul %15, %14, %cst_14 {dimension_numbers = #tpu.dot_dimension_numbers<[1], [0], [0], [1], [0, 0, 1, 1], [], []>} : vector<16x64xf32>, vector<64x8xf32>, vector<16x8xf32> -> vector<16x8xf32>
    %c0_15 = arith.constant 0 : index
    %c0_16 = arith.constant 0 : index
    %17 = vector.load %arg6[%c0_15, %c0_16] : memref<16x1xf32, #tpu.memory_space<vmem>>, vector<16x1xf32>
    %18 = vector.broadcast %17 : vector<16x1xf32> to vector<16x8xf32>
    %19 = arith.addf %16, %18 : vector<16x8xf32>
    %cst_17 = arith.constant 0.000000e+00 : f32
    %20 = vector.broadcast %cst_17 : f32 to vector<16x8xf32>
    %21 = arith.maximumf %19, %20 : vector<16x8xf32>
    %c0_18 = arith.constant 0 : index
    %c0_19 = arith.constant 0 : index
    %22 = vector.load %arg7[%c0_18, %c0_19] : memref<16x8xf32, #tpu.memory_space<vmem>>, vector<16x8xf32>
    tpu.vector_store %arg7[%c0_18, %c0_19], %21 {strides = array<i32>} : memref<16x8xf32, #tpu.memory_space<vmem>>, vector<16x8xf32>,
    return
  }
}

</mosaic_0001>

<llo_original>
// kernel: tpu_custom_call.1
$region0: #{tpu_custom_call.1}
  #allocation0 [shape = 'u32[]', space=smem, size = 0x4, offset = 0x4, fixed_abs, tag = 'smem constant byte address 0x4 - core index']
  #allocation1 [shape = 'u32[72,128]{1,0:T(1,128)}', space=vmem, size = 0x9000, scoped, tag = 'internal scratch']
  %s0 = inlined_call_operand.vmem [shape: f32[8,8], index: 0, kind: input, shape index: {}]
  %s1 = inlined_call_operand.vmem [shape: f32[32,8], index: 1, kind: input, shape index: {}]
  %s2 = inlined_call_operand.vmem [shape: f32[32,1], index: 2, kind: input, shape index: {}]
  %s3 = inlined_call_operand.vmem [shape: f32[64,32], index: 3, kind: input, shape index: {}]
  %s4 = inlined_call_operand.vmem [shape: f32[64,1], index: 4, kind: input, shape index: {}]
  %s5 = inlined_call_operand.vmem [shape: f32[16,64], index: 5, kind: input, shape index: {}]
  %s6 = inlined_call_operand.vmem [shape: f32[16,1], index: 6, kind: input, shape index: {}]
  %s7 = inlined_call_operand.vmem [shape: f32[16,8], index: 7, kind: output, shape index: {}]
  %s8 = sld [smem:[#allocation0]]
  $region38: #{tpu_custom_call.1} parent=0
    _
  %s10 = ssub.s32 1, %s8
  %s11 = scalar_select 0, %s10, %s8
  // Predicated region
  $region2: #{tpu_custom_call.1} parent=0 // pred_check
    _
  $region3: #{tpu_custom_call.1} parent=0 // pred_check_branch
    %13 = sbr.rel (0) target = $region5
  $region4: #{tpu_custom_call.1} parent=0 // pred_region
    _
  $region5: #{tpu_custom_call.1} parent=0 // pred_fallthru
    _
  // Predicated region
  $region6: #{tpu_custom_call.1} parent=0 // pred_check
    _
  $region7: #{tpu_custom_call.1} parent=0 // pred_check_branch
    %15 = sbr.rel (0) target = $region9
  $region8: #{tpu_custom_call.1} parent=0 // pred_region
    _
  $region9: #{tpu_custom_call.1} parent=0 // pred_fallthru
    _
  // Predicated region
  $region10: #{tpu_custom_call.1} parent=0 // pred_check
    _
  $region11: #{tpu_custom_call.1} parent=0 // pred_check_branch
    %17 = sbr.rel (0) target = $region13
  $region12: #{tpu_custom_call.1} parent=0 // pred_region
    _
  $region13: #{tpu_custom_call.1} parent=0 // pred_fallthru
    _
  // Predicated region
  $region14: #{tpu_custom_call.1} parent=0 // pred_check
    _
  $region15: #{tpu_custom_call.1} parent=0 // pred_check_branch
    %19 = sbr.rel (0) target = $region17
  $region16: #{tpu_custom_call.1} parent=0 // pred_region
    _
  $region17: #{tpu_custom_call.1} parent=0 // pred_fallthru
    _
  // Predicated region
  $region18: #{tpu_custom_call.1} parent=0 // pred_check
    _
  $region19: #{tpu_custom_call.1} parent=0 // pred_check_branch
    %21 = sbr.rel (0) target = $region21
  $region20: #{tpu_custom_call.1} parent=0 // pred_region
    _
  $region21: #{tpu_custom_call.1} parent=0 // pred_fallthru
    _
  // Predicated region
  $region22: #{tpu_custom_call.1} parent=0 // pred_check
    _
  $region23: #{tpu_custom_call.1} parent=0 // pred_check_branch
    %23 = sbr.rel (0) target = $region25
  $region24: #{tpu_custom_call.1} parent=0 // pred_region
    _
  $region25: #{tpu_custom_call.1} parent=0 // pred_fallthru
    _
  // Predicated region
  $region26: #{tpu_custom_call.1} parent=0 // pred_check
    _
  $region27: #{tpu_custom_call.1} parent=0 // pred_check_branch
    %25 = sbr.rel (0) target = $region29
  $region28: #{tpu_custom_call.1} parent=0 // pred_region
    _
  $region29: #{tpu_custom_call.1} parent=0 // pred_fallthru
    _
  %v26 = vld [vmem:[%s0] sm:$0xff]
  %v27 = vld [vmem:[%s1] sm:$0xff]
  %v28 = vld [vmem:[%s1 + $0x8] sm:$0xff]
  %v29 = vld [vmem:[%s1 + $0x10] sm:$0xff]
  %v30 = vld [vmem:[%s1 + $0x18] sm:$0xff]
  %v31 = vld [vmem:[%s2] sm:$0xff]
  %v32 = vld [vmem:[%s2 + $0x8] sm:$0xff]
  %v33 = vld [vmem:[%s2 + $0x10] sm:$0xff]
  %v34 = vld [vmem:[%s2 + $0x18] sm:$0xff]
  %36 = vset.pattern.permute.xlu0 0
  %37 = vperm.xlu0 %36, %v31
  %v38 = vpop.permute.xlu0 %37
  %41 = vset.pattern.permute.xlu0 0
  %42 = vperm.xlu0 %41, %v32
  %v43 = vpop.permute.xlu0 %42
  %46 = vset.pattern.permute.xlu0 0
  %47 = vperm.xlu0 %46, %v33
  %v48 = vpop.permute.xlu0 %47
  %51 = vset.pattern.permute.xlu0 0
  %52 = vperm.xlu0 %51, %v34
  %v53 = vpop.permute.xlu0 %52
  %vm55 = vcmask 64512
  %v57 = vsel %vm55, %v27, 0
  %v60 = vsel %vm55, %v28, 0
  %v63 = vsel %vm55, %v29, 0
  %v66 = vsel %vm55, %v30, 0
  %68 = vmatpush.msra.mxu0 0.0
  %69 = vmatpush.msra.mxu0 0.0
  %70 = vmatpush.msra.mxu0 0.0
  %71 = vmatpush.msra.mxu0 0.0
  %72 = vmatpush.msra.mxu0 0.0
  %73 = vmatpush.msra.mxu0 0.0
  %74 = vmatpush.msra.mxu0 0.0
  %75 = vmatpush.msra.mxu0 0.0
  %76 = vmatpush.msra.mxu0 0.0
  %77 = vmatpush.msra.mxu0 0.0
  %78 = vmatpush.msra.mxu0 0.0
  %79 = vmatpush.msra.mxu0 0.0
  %80 = vmatpush.msra.mxu0 0.0
  %81 = vmatpush.msra.mxu0 0.0
  %82 = vmatpush.msra.mxu0 0.0
  %83 = vmatpush.msra.mxu0 %v26
  %84 = vmatmul.f32.gmra.mxu0 %v57
  %v85 = vpop.f32.mrf.mxu0
  %v86 = vadd.f32 %v38, %v85
  %87 = vmatmul.f32.gmra.mxu0 %v60
  %v88 = vpop.f32.mrf.mxu0
  %v89 = vadd.f32 %v43, %v88
  %90 = vmatmul.f32.gmra.mxu0 %v63
  %v91 = vpop.f32.mrf.mxu0
  %v92 = vadd.f32 %v48, %v91
  %93 = vmatmul.f32.gmra.mxu0 %v66
  %v94 = vpop.f32.mrf.mxu0
  %v95 = vadd.f32 %v53, %v94
  %96 = vdwg.mxu0
  %v97 = vmax.f32 %v86, 0.0
  %v98 = vmax.f32 %v89, 0.0
  %v99 = vmax.f32 %v92, 0.0
  %v100 = vmax.f32 %v95, 0.0
  %v101 = vld [vmem:[%s3] sm:$0xff]
  %v102 = vld [vmem:[%s3 + $0x8] sm:$0xff]
  %v103 = vld [vmem:[%s3 + $0x10] sm:$0xff]
  %v104 = vld [vmem:[%s3 + $0x18] sm:$0xff]
  %v105 = vld [vmem:[%s3 + $0x20] sm:$0xff]
  %v106 = vld [vmem:[%s3 + $0x28] sm:$0xff]
  %v107 = vld [vmem:[%s3 + $0x30] sm:$0xff]
  %v108 = vld [vmem:[%s3 + $0x38] sm:$0xff]
  %v109 = vld [vmem:[%s4] sm:$0xff]
  %v110 = vld [vmem:[%s4 + $0x8] sm:$0xff]
  %v111 = vld [vmem:[%s4 + $0x10] sm:$0xff]
  %v112 = vld [vmem:[%s4 + $0x18] sm:$0xff]
  %v113 = vld [vmem:[%s4 + $0x20] sm:$0xff]
  %v114 = vld [vmem:[%s4 + $0x28] sm:$0xff]
  %v115 = vld [vmem:[%s4 + $0x30] sm:$0xff]
  %v116 = vld [vmem:[%s4 + $0x38] sm:$0xff]
  %118 = vset.pattern.permute.xlu0 0
  %119 = vperm.xlu0 %118, %v109
  %v120 = vpop.permute.xlu0 %119
  %123 = vset.pattern.permute.xlu0 0
  %124 = vperm.xlu0 %123, %v110
  %v125 = vpop.permute.xlu0 %124
  %128 = vset.pattern.permute.xlu0 0
  %129 = vperm.xlu0 %128, %v111
  %v130 = vpop.permute.xlu0 %129
  %133 = vset.pattern.permute.xlu0 0
  %134 = vperm.xlu0 %133, %v112
  %v135 = vpop.permute.xlu0 %134
  %138 = vset.pattern.permute.xlu0 0
  %139 = vperm.xlu0 %138, %v113
  %v140 = vpop.permute.xlu0 %139
  %143 = vset.pattern.permute.xlu0 0
  %144 = vperm.xlu0 %143, %v114
  %v145 = vpop.permute.xlu0 %144
  %148 = vset.pattern.permute.xlu0 0
  %149 = vperm.xlu0 %148, %v115
  %v150 = vpop.permute.xlu0 %149
  %153 = vset.pattern.permute.xlu0 0
  %154 = vperm.xlu0 %153, %v116
  %v155 = vpop.permute.xlu0 %154
  %vm157 = vcmask 261120
  %v159 = vsel %vm157, %v101, 0
  %v162 = vsel %vm157, %v102, 0
  %v165 = vsel %vm157, %v103, 0
  %v168 = vsel %vm157, %v104, 0
  %v171 = vsel %vm157, %v105, 0
  %v174 = vsel %vm157, %v106, 0
  %v177 = vsel %vm157, %v107, 0
  %v180 = vsel %vm157, %v108, 0
  %182 = vmatpush.msra.mxu0 0.0
  %183 = vmatpush.msra.mxu0 0.0
  %184 = vmatpush.msra.mxu0 0.0
  %185 = vmatpush.msra.mxu0 0.0
  %186 = vmatpush.msra.mxu0 0.0
  %187 = vmatpush.msra.mxu0 0.0
  %188 = vmatpush.msra.mxu0 0.0
  %189 = vmatpush.msra.mxu0 0.0
  %190 = vmatpush.msra.mxu0 0.0
  %191 = vmatpush.msra.mxu0 0.0
  %192 = vmatpush.msra.mxu0 0.0
  %193 = vmatpush.msra.mxu0 0.0
  %194 = vmatpush.msra.mxu0 %v100
  %195 = vmatpush.msra.mxu0 %v99
  %196 = vmatpush.msra.mxu0 %v98
  %197 = vmatpush.msra.mxu0 %v97
  %198 = vmatmul.f32.gmra.mxu0 %v159
  %v199 = vpop.f32.mrf.mxu0
  %v200 = vadd.f32 %v120, %v199
  %201 = vmatmul.f32.gmra.mxu0 %v162
  %v202 = vpop.f32.mrf.mxu0
  %v203 = vadd.f32 %v125, %v202
  %204 = vmatmul.f32.gmra.mxu0 %v165
  %v205 = vpop.f32.mrf.mxu0
  %v206 = vadd.f32 %v130, %v205
  %207 = vmatmul.f32.gmra.mxu0 %v168
  %v208 = vpop.f32.mrf.mxu0
  %v209 = vadd.f32 %v135, %v208
  %210 = vmatmul.f32.gmra.mxu0 %v171
  %v211 = vpop.f32.mrf.mxu0
  %v212 = vadd.f32 %v140, %v211
  %213 = vmatmul.f32.gmra.mxu0 %v174
  %v214 = vpop.f32.mrf.mxu0
  %v215 = vadd.f32 %v145, %v214
  %216 = vmatmul.f32.gmra.mxu0 %v177
  %v217 = vpop.f32.mrf.mxu0
  %v218 = vadd.f32 %v150, %v217
  %219 = vmatmul.f32.gmra.mxu0 %v180
  %v220 = vpop.f32.mrf.mxu0
  %v221 = vadd.f32 %v155, %v220
  %222 = vdwg.mxu0
  %v223 = vmax.f32 %v200, 0.0
  %v224 = vmax.f32 %v203, 0.0
  %v225 = vmax.f32 %v206, 0.0
  %v226 = vmax.f32 %v209, 0.0
  %v227 = vmax.f32 %v212, 0.0
  %v228 = vmax.f32 %v215, 0.0
  %v229 = vmax.f32 %v218, 0.0
  %v230 = vmax.f32 %v221, 0.0
  %v231 = vld [vmem:[%s5] sm:$0xff]
  %v232 = vld [vmem:[%s5 + $0x8] sm:$0xff]
  %v233 = vld [vmem:[%s6] sm:$0xff]
  %v234 = vld [vmem:[%s6 + $0x8] sm:$0xff]
  %236 = vset.pattern.permute.xlu0 0
  %237 = vperm.xlu0 %236, %v233
  %v238 = vpop.permute.xlu0 %237
  %241 = vset.pattern.permute.xlu0 0
  %242 = vperm.xlu0 %241, %v234
  %v243 = vpop.permute.xlu0 %242
  %vm245 = vcmask 523264
  %v247 = vsel %vm245, %v231, 0
  %v250 = vsel %vm245, %v232, 0
  %252 = vmatpush.msra.mxu0 0.0
  %253 = vmatpush.msra.mxu0 0.0
  %254 = vmatpush.msra.mxu0 0.0
  %255 = vmatpush.msra.mxu0 0.0
  %256 = vmatpush.msra.mxu0 0.0
  %257 = vmatpush.msra.mxu0 0.0
  %258 = vmatpush.msra.mxu0 0.0
  %259 = vmatpush.msra.mxu0 0.0
  %260 = vmatpush.msra.mxu0 %v230
  %261 = vmatpush.msra.mxu0 %v229
  %262 = vmatpush.msra.mxu0 %v228
  %263 = vmatpush.msra.mxu0 %v227
  %264 = vmatpush.msra.mxu0 %v226
  %265 = vmatpush.msra.mxu0 %v225
  %266 = vmatpush.msra.mxu0 %v224
  %267 = vmatpush.msra.mxu0 %v223
  %268 = vmatmul.f32.gmra.mxu0 %v247
  %v269 = vpop.f32.mrf.mxu0
  %v270 = vadd.f32 %v238, %v269
  %271 = vmatmul.f32.gmra.mxu0 %v250
  %v272 = vpop.f32.mrf.mxu0
  %v273 = vadd.f32 %v243, %v272
  %274 = vdwg.mxu0
  %v275 = vmax.f32 %v270, 0.0
  %v276 = vmax.f32 %v273, 0.0
  %277 = vst.msk [vmem:[%s7] sm:$0xff] %vm55, %v275
  %278 = vst.msk [vmem:[%s7 + $0x8] sm:$0xff] %vm55, %v276
  // Predicated region
  $region30: #{tpu_custom_call.1} parent=0 // pred_check
    _
  $region31: #{tpu_custom_call.1} parent=0 // pred_check_branch
    %280 = sbr.rel (0) target = $region33
  $region32: #{tpu_custom_call.1} parent=0 // pred_region
    _
  $region33: #{tpu_custom_call.1} parent=0 // pred_fallthru
    _
  // Predicated region
  $region34: #{tpu_custom_call.1} parent=0 // pred_check
    _
  $region35: #{tpu_custom_call.1} parent=0 // pred_check_branch
    %282 = sbr.rel (0) target = $region37
  $region36: #{tpu_custom_call.1} parent=0 // pred_region
    _
  $region37: #{tpu_custom_call.1} parent=0 // pred_fallthru
    _

</llo_original>
